<compile_context>
chip_gen: v6e
topology: v6e:2x2x1
jax: 0.10.0
libtpu: 0.0.40
codegen_flags: <defaults>
</compile_context>

<pallas_src>
import functools

import jax
import jax.numpy as jnp
from jax.experimental import pallas as pl
from jax.experimental.pallas import tpu as pltpu

# Fixed architecture of the Actor MLP: state_dim -> 128 -> 64 -> {mean, log_std}.
HID1 = 128
HID2 = 64
PARAM_COLS = 128          # lane width of the packed parameter buffer

# Row layout of the packed parameter buffer. Every region starts at a multiple
# of 8 rows and spans the full 128 lanes, so all in-kernel slices are aligned.
W1_R0 = 0                 # rows [  0,   8): W1      (state_dim, 128), zero-padded rows
W2_R0 = 8                 # rows [  8, 136): W2_pad  (128, 128), cols 64..127 zero
WH_R0 = W2_R0 + HID1      # rows [136, 264): WH_pad  (128, 128) = [Wm | Wl | 0], rows 64.. zero
BIAS_R0 = WH_R0 + HID1    # rows [264, 272): b1, b2_pad, bh_pad, clamp_lo, clamp_hi, 0, 0, 0
PARAM_ROWS = BIAS_R0 + 8  # 272


def _round_up(x, m):
    return ((x + m - 1) // m) * m


def actor_kernel(s_ref, p_ref, o_ref, *, state_dim, compute_dtype):
    # s_ref: (TB, state_dim) state tile
    # p_ref: (272, 128) packed params (VMEM-resident across the grid)
    # o_ref: (TB, 128) lane-dense head output [mean | clamped log_std | 0 ...]
    x = s_ref[...].astype(jnp.float32)                      # (TB, state_dim)

    w1 = p_ref[W1_R0:W1_R0 + 8, :]                           # (8, 128) aligned load
    bias = p_ref[BIAS_R0:BIAS_R0 + 8, :]                     # (8, 128) aligned load
    b1 = bias[0:1, :]
    b2 = bias[1:2, :]
    bh = bias[2:3, :]
    lo = bias[3:4, :]                                        # -inf on mean lanes, -20 on log_std lanes
    hi = bias[4:5, :]                                        # +inf on mean lanes, 0.5 on log_std lanes

    # layer 1: state_dim is tiny (<= 8) -> VPU broadcast-FMA, no K padding / no
    # small-K matmul needed.
    z1 = x[:, 0:1] * w1[0:1, :] + b1                         # (TB, 128)
    for k in range(1, state_dim):
        z1 = z1 + x[:, k:k + 1] * w1[k:k + 1, :]
    h1 = jnp.tanh(z1.astype(compute_dtype))                  # (TB, 128)

    # layer 2: W2 zero-padded to (128, 128) -> full-lane slice, no relayout.
    w2 = p_ref[W2_R0:W2_R0 + HID1, :].astype(compute_dtype)  # (128, 128)
    z2 = jnp.dot(h1, w2, preferred_element_type=jnp.float32) + b2
    h2 = jnp.tanh(z2.astype(compute_dtype))                  # (TB, 128); lanes 64.. are 0

    # fused head: one matmul for [mean | log_std], zero-padded to 128 lanes.
    wh = p_ref[WH_R0:WH_R0 + HID1, :].astype(compute_dtype)  # (128, 128)
    head = jnp.dot(h2, wh, preferred_element_type=jnp.float32) + bh   # (TB, 128) f32

    # per-lane clamp: mean lanes pass through (-inf/+inf), log_std lanes clamp to [-20, 0.5].
    o_ref[...] = jnp.minimum(jnp.maximum(head, lo), hi).astype(o_ref.dtype)


@functools.partial(jax.jit,
                   static_argnames=("action_dim", "block_b", "compute_dtype"))
def actor_forward(state, packed_params, *, action_dim, block_b=128,
                  compute_dtype=jnp.float32):
    """state: (B, state_dim) f32. Returns (mean, log_std), each (B, action_dim)."""
    B, state_dim = state.shape
    assert state_dim <= 8
    assert 2 * action_dim <= PARAM_COLS

    if B <= block_b:
        # Single tile: block shape == full array shape (allowed even if B not a
        # multiple of 8). No padding of any kind.
        TB = B
    else:
        TB = _round_up(block_b, 8)
    grid = (pl.cdiv(B, TB),)

    kernel = functools.partial(actor_kernel, state_dim=state_dim,
                               compute_dtype=compute_dtype)

    out = pl.pallas_call(
        kernel,
        out_shape=jax.ShapeDtypeStruct((B, PARAM_COLS), jnp.float32),
        grid=grid,
        in_specs=[
            # state tiles (ragged last tile OK: rows are independent)
            pl.BlockSpec((TB, state_dim), lambda i: (i, 0)),
            # packed params: constant index_map -> resident in VMEM across grid
            pl.BlockSpec((PARAM_ROWS, PARAM_COLS), lambda i: (0, 0)),
        ],
        out_specs=pl.BlockSpec((TB, PARAM_COLS), lambda i: (i, 0)),
        compiler_params=pltpu.CompilerParams(
            dimension_semantics=("parallel",)),
    )(state, packed_params)

    mean = out[:, :action_dim]
    log_std = out[:, action_dim:2 * action_dim]
    return mean, log_std


def init_actor_params(key, state_dim, action_dim):
    """Deterministic synthetic init (uniform, roughly PyTorch's fan-in scaling)."""
    ks = jax.random.split(key, 8)

    def lin(kw, kb, fan_in, fan_out):
        bound = 1.0 / (float(fan_in) ** 0.5)
        w = jax.random.uniform(kw, (fan_in, fan_out), jnp.float32, -bound, bound)
        b = jax.random.uniform(kb, (1, fan_out), jnp.float32, -bound, bound)
        return w, b

    w1, b1 = lin(ks[0], ks[1], state_dim, HID1)
    w2, b2 = lin(ks[2], ks[3], HID1, HID2)
    wm, bm = lin(ks[4], ks[5], HID2, action_dim)
    wl, bl = lin(ks[6], ks[7], HID2, action_dim)
    return {"w1": w1, "b1": b1, "w2": w2, "b2": b2,
            "wm": wm, "bm": bm, "wl": wl, "bl": bl}


def pack_actor_params(p, state_dim, action_dim):
    """Pack all weights/biases (+ per-lane clamp rows) into one (272, 128) buffer."""
    assert state_dim <= 8 and 2 * action_dim <= PARAM_COLS
    nh = 2 * action_dim
    wh = jnp.concatenate([p["wm"], p["wl"]], axis=1)   # (64, 2*action_dim)
    bh = jnp.concatenate([p["bm"], p["bl"]], axis=1)   # (1, 2*action_dim)

    P = jnp.zeros((PARAM_ROWS, PARAM_COLS), jnp.float32)
    P = P.at[W1_R0:W1_R0 + state_dim, 0:HID1].set(p["w1"])
    P = P.at[W2_R0:W2_R0 + HID1, 0:HID2].set(p["w2"])
    P = P.at[WH_R0:WH_R0 + HID2, 0:nh].set(wh)
    P = P.at[BIAS_R0 + 0, 0:HID1].set(p["b1"][0])
    P = P.at[BIAS_R0 + 1, 0:HID2].set(p["b2"][0])
    P = P.at[BIAS_R0 + 2, 0:nh].set(bh[0])

    lo = jnp.full((PARAM_COLS,), -jnp.inf, jnp.float32).at[action_dim:nh].set(-20.0)
    hi = jnp.full((PARAM_COLS,), jnp.inf, jnp.float32).at[action_dim:nh].set(0.5)
    P = P.at[BIAS_R0 + 3].set(lo)
    P = P.at[BIAS_R0 + 4].set(hi)
    return P


def actor_forward_ref(state, p):
    """Pure-JAX reference for correctness checking."""
    x = jnp.tanh(state @ p["w1"] + p["b1"])
    x = jnp.tanh(x @ p["w2"] + p["b2"])
    mean = x @ p["wm"] + p["bm"]
    log_std = jnp.clip(x @ p["wl"] + p["bl"], -20.0, 0.5)
    return mean, log_std


if __name__ == "__main__":
    # Inverted pendulum: state_dim=3 (cos theta, sin theta, theta_dot), action_dim=1.
    state_dim, action_dim, batch = 3, 1, 2

    key = jax.random.PRNGKey(0)
    k_params, k_state, k_big = jax.random.split(key, 3)
    params = init_actor_params(k_params, state_dim, action_dim)
    packed = pack_actor_params(params, state_dim, action_dim)

    # Small per-step batch (typical rollout call): single tile, no padding.
    state = jax.random.normal(k_state, (batch, state_dim), dtype=jnp.float32)
    mean, log_std = actor_forward(state, packed, action_dim=action_dim)
    jax.block_until_ready((mean, log_std))

    mean_ref, log_std_ref = actor_forward_ref(state, params)
    assert mean.shape == (batch, action_dim)
    assert log_std.shape == (batch, action_dim)
    assert jnp.allclose(mean, mean_ref, atol=1e-5, rtol=1e-5)
    assert jnp.allclose(log_std, log_std_ref, atol=1e-5, rtol=1e-5)

    # Larger ragged batch: multi-step grid (TB=128), ragged last tile, weights
    # resident in VMEM, "parallel" grid axis (both TCs on v7x).
    big_state = jax.random.normal(k_big, (300, state_dim), dtype=jnp.float32)
    mean_b, log_std_b = actor_forward(big_state, packed,
                                      action_dim=action_dim, block_b=128)
    jax.block_until_ready((mean_b, log_std_b))
    mean_b_ref, log_std_b_ref = actor_forward_ref(big_state, params)
    assert jnp.allclose(mean_b, mean_b_ref, atol=1e-5, rtol=1e-5)
    assert jnp.allclose(log_std_b, log_std_b_ref, atol=1e-5, rtol=1e-5)

    # bf16 activations (halves EUP tanh cost) only on bf16-capable VPU/EUP
    # generations (v6e / v7x); keep f32 on v5e and older.
    kind = jax.devices()[0].device_kind.lower()
    if ("v6" in kind) or ("v7" in kind) or ("7x" in kind):
        mean_h, log_std_h = actor_forward(big_state, packed,
                                          action_dim=action_dim, block_b=128,
                                          compute_dtype=jnp.bfloat16)
        jax.block_until_ready((mean_h, log_std_h))
        assert jnp.allclose(mean_h, mean_b_ref, atol=1e-1, rtol=1e-1)
        assert jnp.allclose(log_std_h, log_std_b_ref, atol=1e-1, rtol=1e-1)

    print("KERNEL_OK")
</pallas_src>

<mosaic_0001>
module attributes {stable_mosaic.version = 11 : i64} {
  func.func @actor_kernel(%arg0: i32, %arg1: memref<2x3xf32, #tpu.memory_space<vmem>>, %arg2: memref<272x128xf32, #tpu.memory_space<vmem>>, %arg3: memref<2x128xf32, #tpu.memory_space<vmem>>) attributes {dimension_semantics = [#tpu.dimension_semantics<parallel>], iteration_bounds = array<i64: 1>, scalar_prefetch = 0 : i64, scratch_operands = 0 : i64, tpu.core_type = #tpu.core_type<tc>, window_params = [{transform_indices = @transform_0, window_bounds = array<i64: 2, 3>}, {pipeline_mode = #tpu.pipeline_mode<synchronous>, transform_indices = @transform_1, window_bounds = array<i64: 272, 128>}, {transform_indices = @transform_2, window_bounds = array<i64: 2, 128>}]} {
    %c0 = arith.constant 0 : index
    %c0_0 = arith.constant 0 : index
    %0 = vector.load %arg1[%c0, %c0_0] : memref<2x3xf32, #tpu.memory_space<vmem>>, vector<2x3xf32>
    %c0_1 = arith.constant 0 : index
    %c0_2 = arith.constant 0 : index
    %1 = vector.load %arg2[%c0_1, %c0_2] : memref<272x128xf32, #tpu.memory_space<vmem>>, vector<8x128xf32>
    %c264 = arith.constant 264 : index
    %c0_3 = arith.constant 0 : index
    %2 = vector.load %arg2[%c264, %c0_3] : memref<272x128xf32, #tpu.memory_space<vmem>>, vector<8x128xf32>
    %3 = vector.extract_strided_slice %2 {offsets = [0, 0], sizes = [1, 128], strides = [1, 1]} : vector<8x128xf32> to vector<1x128xf32>
    %4 = vector.extract_strided_slice %2 {offsets = [1, 0], sizes = [1, 128], strides = [1, 1]} : vector<8x128xf32> to vector<1x128xf32>
    %5 = vector.extract_strided_slice %2 {offsets = [2, 0], sizes = [1, 128], strides = [1, 1]} : vector<8x128xf32> to vector<1x128xf32>
    %6 = vector.extract_strided_slice %2 {offsets = [3, 0], sizes = [1, 128], strides = [1, 1]} : vector<8x128xf32> to vector<1x128xf32>
    %7 = vector.extract_strided_slice %2 {offsets = [4, 0], sizes = [1, 128], strides = [1, 1]} : vector<8x128xf32> to vector<1x128xf32>
    %8 = vector.extract_strided_slice %0 {offsets = [0, 0], sizes = [2, 1], strides = [1, 1]} : vector<2x3xf32> to vector<2x1xf32>
    %9 = vector.extract_strided_slice %1 {offsets = [0, 0], sizes = [1, 128], strides = [1, 1]} : vector<8x128xf32> to vector<1x128xf32>
    %10 = vector.broadcast %8 : vector<2x1xf32> to vector<2x128xf32>
    %11 = vector.broadcast %9 : vector<1x128xf32> to vector<2x128xf32>
    %12 = arith.mulf %10, %11 : vector<2x128xf32>
    %13 = vector.broadcast %3 : vector<1x128xf32> to vector<2x128xf32>
    %14 = arith.addf %12, %13 : vector<2x128xf32>
    %15 = vector.extract_strided_slice %0 {offsets = [0, 1], sizes = [2, 1], strides = [1, 1]} : vector<2x3xf32> to vector<2x1xf32>
    %16 = vector.extract_strided_slice %1 {offsets = [1, 0], sizes = [1, 128], strides = [1, 1]} : vector<8x128xf32> to vector<1x128xf32>
    %17 = vector.broadcast %15 : vector<2x1xf32> to vector<2x128xf32>
    %18 = vector.broadcast %16 : vector<1x128xf32> to vector<2x128xf32>
    %19 = arith.mulf %17, %18 : vector<2x128xf32>
    %20 = arith.addf %14, %19 : vector<2x128xf32>
    %21 = vector.extract_strided_slice %0 {offsets = [0, 2], sizes = [2, 1], strides = [1, 1]} : vector<2x3xf32> to vector<2x1xf32>
    %22 = vector.extract_strided_slice %1 {offsets = [2, 0], sizes = [1, 128], strides = [1, 1]} : vector<8x128xf32> to vector<1x128xf32>
    %23 = vector.broadcast %21 : vector<2x1xf32> to vector<2x128xf32>
    %24 = vector.broadcast %22 : vector<1x128xf32> to vector<2x128xf32>
    %25 = arith.mulf %23, %24 : vector<2x128xf32>
    %26 = arith.addf %20, %25 : vector<2x128xf32>
    %27 = math.tanh %26 : vector<2x128xf32>
    %c8 = arith.constant 8 : index
    %c0_4 = arith.constant 0 : index
    %28 = vector.load %arg2[%c8, %c0_4] : memref<272x128xf32, #tpu.memory_space<vmem>>, vector<128x128xf32>
    %cst = arith.constant dense<0.000000e+00> : vector<2x128xf32>
    %29 = tpu.matmul %27, %28, %cst {dimension_numbers = #tpu.dot_dimension_numbers<[1], [0], [0], [1], [0, 0, 1, 1], [], []>} : vector<2x128xf32>, vector<128x128xf32>, vector<2x128xf32> -> vector<2x128xf32>
    %30 = vector.broadcast %4 : vector<1x128xf32> to vector<2x128xf32>
    %31 = arith.addf %29, %30 : vector<2x128xf32>
    %32 = math.tanh %31 : vector<2x128xf32>
    %c136 = arith.constant 136 : index
    %c0_5 = arith.constant 0 : index
    %33 = vector.load %arg2[%c136, %c0_5] : memref<272x128xf32, #tpu.memory_space<vmem>>, vector<128x128xf32>
    %cst_6 = arith.constant dense<0.000000e+00> : vector<2x128xf32>
    %34 = tpu.matmul %32, %33, %cst_6 {dimension_numbers = #tpu.dot_dimension_numbers<[1], [0], [0], [1], [0, 0, 1, 1], [], []>} : vector<2x128xf32>, vector<128x128xf32>, vector<2x128xf32> -> vector<2x128xf32>
    %35 = vector.broadcast %5 : vector<1x128xf32> to vector<2x128xf32>
    %36 = arith.addf %34, %35 : vector<2x128xf32>
    %37 = vector.broadcast %6 : vector<1x128xf32> to vector<2x128xf32>
    %38 = arith.maximumf %36, %37 : vector<2x128xf32>
    %39 = vector.broadcast %7 : vector<1x128xf32> to vector<2x128xf32>
    %40 = arith.minimumf %38, %39 : vector<2x128xf32>
    %c0_7 = arith.constant 0 : index
    %c0_8 = arith.constant 0 : index
    %41 = vector.load %arg3[%c0_7, %c0_8] : memref<2x128xf32, #tpu.memory_space<vmem>>, vector<2x128xf32>
    tpu.vector_store %arg3[%c0_7, %c0_8], %40 {strides = array<i32>} : memref<2x128xf32, #tpu.memory_space<vmem>>, vector<2x128xf32>,
    return
  }
  func.func @transform_0(%arg0: i32) -> (i32, i32) {
    %c0_i32 = arith.constant 0 : i32
    %c0_i32_0 = arith.constant 0 : i32
    return %arg0, %c0_i32 : i32, i32
  }
  func.func @transform_1(%arg0: i32) -> (i32, i32) {
    %c0_i32 = arith.constant 0 : i32
    %c0_i32_0 = arith.constant 0 : i32
    %c0_i32_1 = arith.constant 0 : i32
    return %c0_i32, %c0_i32_0 : i32, i32
  }
  func.func @transform_2(%arg0: i32) -> (i32, i32) {
    %c0_i32 = arith.constant 0 : i32
    %c0_i32_0 = arith.constant 0 : i32
    return %arg0, %c0_i32 : i32, i32
  }
}

</mosaic_0001>

<llo_original>
// kernel: actor_forward.1
$region0: #{actor_forward.1}
  #allocation0 [shape = 'u32[]', space=smem, size = 0x4, offset = 0x4, fixed_abs, tag = 'smem constant byte address 0x4 - core index']
  #allocation1 [shape = 'u32[144,128]{1,0:T(1,128)}', space=vmem, size = 0x12000, scoped, tag = 'internal scratch']
  %s0 = inlined_call_operand.hbm [shape: f32[2,3], index: 0, kind: input, shape index: {}]
  %s1 = inlined_call_operand.hbm [shape: f32[272,128], index: 1, kind: input, shape index: {}]
  %s2 = inlined_call_operand.vmem [shape: f32[2,128], index: 2, kind: output, shape index: {}]
  %s3 = sld [smem:[#allocation0]]
  $region26: #{actor_forward.1} parent=0
    _
  %s5 = ssub.s32 1, %s3
  %s6 = scalar_select 0, %s5, %s3
  $region1: #{actor_forward.1} parent=0
    #allocation2 [shape = 'u8[1024]{0}', space=vmem, size = 0x400, scoped, tag = 'input window, operand 0, single buffered']
    #allocation3 [shape = 's32[1]{0}', space=sflag, size = 0x4, scoped, tag = 'scoped memory for actor_forward.1']
    #allocation4 [shape = 'u8[139264]{0}', space=vmem, size = 0x22000, scoped, tag = 'input window, operand 1, single buffered']
    #allocation5 [shape = 's32[1]{0}', space=sflag, size = 0x4, scoped, tag = 'scoped memory for actor_forward.1']
    %7 = vsyncpa [#allocation3], 0
    %8 = vsyncpa [#allocation5], 0
    // Predicated region
    $region2: #{actor_forward.1} parent=1 // pred_check
      _
    $region3: #{actor_forward.1} parent=1 // pred_check_branch
      %10 = sbr.rel (0) target = $region5
    $region4: #{actor_forward.1} parent=1 // pred_region
      %s12 = ssub.s32 32, 32
      %13 = vsyncadd [#allocation3], %s12
      %s15 = sshll.u32 [#allocation2], 4
      %s16 = int_to_ptr.vmem [resolvable:$true] %s15
      %18 = dma.hbm_to_vmem [thread:$0]  %s0, 32, %s16, [#allocation3]
    $region5: #{actor_forward.1} parent=1 // pred_fallthru
      _
    // Predicated region
    $region6: #{actor_forward.1} parent=1 // pred_check
      _
    $region7: #{actor_forward.1} parent=1 // pred_check_branch
      %20 = sbr.rel (0) target = $region9
    $region8: #{actor_forward.1} parent=1 // pred_region
      %s22 = ssub.s32 4352, 4352
      %23 = vsyncadd [#allocation5], %s22
      %s24 = sshll.u32 [#allocation4], 4
      %s25 = int_to_ptr.vmem [resolvable:$true] %s24
      %30 = dma.hbm_to_vmem [thread:$0]  %s1, 4352, %s25, [#allocation5], 128, 128, 8
    $region9: #{actor_forward.1} parent=1 // pred_fallthru
      _
    // Predicated region
    $region10: #{actor_forward.1} parent=1 // pred_check
      _
    $region11: #{actor_forward.1} parent=1 // pred_check_branch
      %32 = sbr.rel (0) target = $region13
    $region12: #{actor_forward.1} parent=1 // pred_region
      %33 = dma.done [#allocation3], 32
    $region13: #{actor_forward.1} parent=1 // pred_fallthru
      _
    // Predicated region
    $region14: #{actor_forward.1} parent=1 // pred_check
      _
    $region15: #{actor_forward.1} parent=1 // pred_check_branch
      %35 = sbr.rel (0) target = $region17
    $region16: #{actor_forward.1} parent=1 // pred_region
      %36 = dma.done [#allocation5], 4352
    $region17: #{actor_forward.1} parent=1 // pred_fallthru
      _
    %v37 = vld [vmem:[#allocation2] sm:$0x3]
    %v38 = vld [vmem:[#allocation4] sm:$0xff]
    %v39 = vld [vmem:[#allocation4 + $0x108] sm:$0xff]
    %41 = vset.pattern.permute.xlu0 0
    %42 = vperm.xlu0 %41, %v37
    %v43 = vpop.permute.xlu0 %42
    %v45 = vlaneseq
    %v46 = vshrl.u32 %v45, 7
    %v47 = vsub.s32 0, %v46
    %v48 = vrot.slane %v38, %v47
    %v49 = vmul.f32 %v43, %v48
    %v50 = vlaneseq
    %v51 = vshrl.u32 %v50, 7
    %v52 = vsub.s32 0, %v51
    %v53 = vrot.slane %v39, %v52
    %v54 = vadd.f32 %v49, %v53
    %55 = vset.pattern.permute.xlu0 1
    %56 = vperm.xlu0 %55, %v37
    %v57 = vpop.permute.xlu0 %56
    %v59 = vlaneseq
    %v60 = vshrl.u32 %v59, 7
    %v61 = vsub.s32 1, %v60
    %v62 = vrot.slane %v38, %v61
    %v63 = vmul.f32 %v57, %v62
    %v64 = vadd.f32 %v54, %v63
    %65 = vset.pattern.permute.xlu0 2
    %66 = vperm.xlu0 %65, %v37
    %v67 = vpop.permute.xlu0 %66
    %v69 = vlaneseq
    %v70 = vshrl.u32 %v69, 7
    %v71 = vsub.s32 2, %v70
    %v72 = vrot.slane %v38, %v71
    %v73 = vmul.f32 %v67, %v72
    %v74 = vadd.f32 %v64, %v73
    %v75 = vtanh.pop %v74
    %v76 = vld [vmem:[#allocation4 + $0x8] sm:$0xff]
    %v77 = vld [vmem:[#allocation4 + $0x10] sm:$0xff]
    %v78 = vld [vmem:[#allocation4 + $0x18] sm:$0xff]
    %v79 = vld [vmem:[#allocation4 + $0x20] sm:$0xff]
    %v80 = vld [vmem:[#allocation4 + $0x28] sm:$0xff]
    %v81 = vld [vmem:[#allocation4 + $0x30] sm:$0xff]
    %v82 = vld [vmem:[#allocation4 + $0x38] sm:$0xff]
    %v83 = vld [vmem:[#allocation4 + $0x40] sm:$0xff]
    %v84 = vld [vmem:[#allocation4 + $0x48] sm:$0xff]
    %v85 = vld [vmem:[#allocation4 + $0x50] sm:$0xff]
    %v86 = vld [vmem:[#allocation4 + $0x58] sm:$0xff]
    %v87 = vld [vmem:[#allocation4 + $0x60] sm:$0xff]
    %v88 = vld [vmem:[#allocation4 + $0x68] sm:$0xff]
    %v89 = vld [vmem:[#allocation4 + $0x70] sm:$0xff]
    %v90 = vld [vmem:[#allocation4 + $0x78] sm:$0xff]
    %v91 = vld [vmem:[#allocation4 + $0x80] sm:$0xff]
    %v92 = vlaneseq
    %v93 = vshrl.u32 %v92, 7
    %v94 = vsub.s32 1, %v93
    %v95 = vrot.slane %v39, %v94
    %96 = vmatprep.subr.mxu0 0.0
    %97 = vmatpush1.msra.mxu0 %v91
    %98 = vmatprep.subr.mxu0 0.0
    %99 = vmatpush1.msra.mxu0 %v90
    %100 = vmatprep.subr.mxu0 0.0
    %101 = vmatpush1.msra.mxu0 %v89
    %102 = vmatprep.subr.mxu0 0.0
    %103 = vmatpush1.msra.mxu0 %v88
    %104 = vmatprep.subr.mxu0 0.0
    %105 = vmatpush1.msra.mxu0 %v87
    %106 = vmatprep.subr.mxu0 0.0
    %107 = vmatpush1.msra.mxu0 %v86
    %108 = vmatprep.subr.mxu0 0.0
    %109 = vmatpush1.msra.mxu0 %v85
    %110 = vmatprep.subr.mxu0 0.0
    %111 = vmatpush1.msra.mxu0 %v84
    %112 = vmatprep.subr.mxu0 0.0
    %113 = vmatpush1.msra.mxu0 %v83
    %114 = vmatprep.subr.mxu0 0.0
    %115 = vmatpush1.msra.mxu0 %v82
    %116 = vmatprep.subr.mxu0 0.0
    %117 = vmatpush1.msra.mxu0 %v81
    %118 = vmatprep.subr.mxu0 0.0
    %119 = vmatpush1.msra.mxu0 %v80
    %120 = vmatprep.subr.mxu0 0.0
    %121 = vmatpush1.msra.mxu0 %v79
    %122 = vmatprep.subr.mxu0 0.0
    %123 = vmatpush1.msra.mxu0 %v78
    %124 = vmatprep.subr.mxu0 0.0
    %125 = vmatpush1.msra.mxu0 %v77
    %126 = vmatprep.subr.mxu0 0.0
    %127 = vmatpush1.msra.mxu0 %v76
    %128 = vmatprep.subr.mxu0 0.0
    %129 = vmatpush2.msra.mxu0 0.0
    %130 = vmatprep.subr.mxu0 0.0
    %131 = vmatpush2.msra.mxu0 0.0
    %132 = vmatprep.subr.mxu0 0.0
    %133 = vmatpush2.msra.mxu0 0.0
    %134 = vmatprep.subr.mxu0 0.0
    %135 = vmatpush2.msra.mxu0 0.0
    %136 = vmatprep.subr.mxu0 0.0
    %137 = vmatpush2.msra.mxu0 0.0
    %138 = vmatprep.subr.mxu0 0.0
    %139 = vmatpush2.msra.mxu0 0.0
    %140 = vmatprep.subr.mxu0 0.0
    %141 = vmatpush2.msra.mxu0 0.0
    %142 = vmatprep.subr.mxu0 0.0
    %143 = vmatpush2.msra.mxu0 0.0
    %144 = vmatprep.subr.mxu0 0.0
    %145 = vmatpush2.msra.mxu0 0.0
    %146 = vmatprep.subr.mxu0 0.0
    %147 = vmatpush2.msra.mxu0 0.0
    %148 = vmatprep.subr.mxu0 0.0
    %149 = vmatpush2.msra.mxu0 0.0
    %150 = vmatprep.subr.mxu0 0.0
    %151 = vmatpush2.msra.mxu0 0.0
    %152 = vmatprep.subr.mxu0 0.0
    %153 = vmatpush2.msra.mxu0 0.0
    %154 = vmatprep.subr.mxu0 0.0
    %155 = vmatpush2.msra.mxu0 0.0
    %156 = vmatprep.subr.mxu0 0.0
    %157 = vmatpush2.msra.mxu0 0.0
    %158 = vmatprep.subr.mxu0 0.0
    %159 = vmatpush2.msra.mxu0 0.0
    %160 = vmatprep.mubr.f32.mxu0 0.0
    %161 = vmatmul.mubr.f32.gmra.mxu0 %v75
    %v162 = vpop.f32.mrf.mxu0
    %v163 = vadd.f32 %v95, %v162
    %v164 = vpop.f32.mrf.mxu0
    %165 = vdwg.mxu0
    %v166 = vtanh.pop %v163
    %v167 = vld [vmem:[#allocation4 + $0x88] sm:$0xff]
    %v168 = vld [vmem:[#allocation4 + $0x90] sm:$0xff]
    %v169 = vld [vmem:[#allocation4 + $0x98] sm:$0xff]
    %v170 = vld [vmem:[#allocation4 + $0xa0] sm:$0xff]
    %v171 = vld [vmem:[#allocation4 + $0xa8] sm:$0xff]
    %v172 = vld [vmem:[#allocation4 + $0xb0] sm:$0xff]
    %v173 = vld [vmem:[#allocation4 + $0xb8] sm:$0xff]
    %v174 = vld [vmem:[#allocation4 + $0xc0] sm:$0xff]
    %v175 = vld [vmem:[#allocation4 + $0xc8] sm:$0xff]
    %v176 = vld [vmem:[#allocation4 + $0xd0] sm:$0xff]
    %v177 = vld [vmem:[#allocation4 + $0xd8] sm:$0xff]
    %v178 = vld [vmem:[#allocation4 + $0xe0] sm:$0xff]
    %v179 = vld [vmem:[#allocation4 + $0xe8] sm:$0xff]
    %v180 = vld [vmem:[#allocation4 + $0xf0] sm:$0xff]
    %v181 = vld [vmem:[#allocation4 + $0xf8] sm:$0xff]
    %v182 = vld [vmem:[#allocation4 + $0x100] sm:$0xff]
    %v183 = vlaneseq
    %v184 = vshrl.u32 %v183, 7
    %v185 = vsub.s32 2, %v184
    %v186 = vrot.slane %v39, %v185
    %187 = vmatprep.subr.mxu0 0.0
    %188 = vmatpush1.msra.mxu0 %v182
    %189 = vmatprep.subr.mxu0 0.0
    %190 = vmatpush1.msra.mxu0 %v181
    %191 = vmatprep.subr.mxu0 0.0
    %192 = vmatpush1.msra.mxu0 %v180
    %193 = vmatprep.subr.mxu0 0.0
    %194 = vmatpush1.msra.mxu0 %v179
    %195 = vmatprep.subr.mxu0 0.0
    %196 = vmatpush1.msra.mxu0 %v178
    %197 = vmatprep.subr.mxu0 0.0
    %198 = vmatpush1.msra.mxu0 %v177
    %199 = vmatprep.subr.mxu0 0.0
    %200 = vmatpush1.msra.mxu0 %v176
    %201 = vmatprep.subr.mxu0 0.0
    %202 = vmatpush1.msra.mxu0 %v175
    %203 = vmatprep.subr.mxu0 0.0
    %204 = vmatpush1.msra.mxu0 %v174
    %205 = vmatprep.subr.mxu0 0.0
    %206 = vmatpush1.msra.mxu0 %v173
    %207 = vmatprep.subr.mxu0 0.0
    %208 = vmatpush1.msra.mxu0 %v172
    %209 = vmatprep.subr.mxu0 0.0
    %210 = vmatpush1.msra.mxu0 %v171
    %211 = vmatprep.subr.mxu0 0.0
    %212 = vmatpush1.msra.mxu0 %v170
    %213 = vmatprep.subr.mxu0 0.0
    %214 = vmatpush1.msra.mxu0 %v169
    %215 = vmatprep.subr.mxu0 0.0
    %216 = vmatpush1.msra.mxu0 %v168
    %217 = vmatprep.subr.mxu0 0.0
    %218 = vmatpush1.msra.mxu0 %v167
    %219 = vmatprep.subr.mxu0 0.0
    %220 = vmatpush2.msra.mxu0 0.0
    %221 = vmatprep.subr.mxu0 0.0
    %222 = vmatpush2.msra.mxu0 0.0
    %223 = vmatprep.subr.mxu0 0.0
    %224 = vmatpush2.msra.mxu0 0.0
    %225 = vmatprep.subr.mxu0 0.0
    %226 = vmatpush2.msra.mxu0 0.0
    %227 = vmatprep.subr.mxu0 0.0
    %228 = vmatpush2.msra.mxu0 0.0
    %229 = vmatprep.subr.mxu0 0.0
    %230 = vmatpush2.msra.mxu0 0.0
    %231 = vmatprep.subr.mxu0 0.0
    %232 = vmatpush2.msra.mxu0 0.0
    %233 = vmatprep.subr.mxu0 0.0
    %234 = vmatpush2.msra.mxu0 0.0
    %235 = vmatprep.subr.mxu0 0.0
    %236 = vmatpush2.msra.mxu0 0.0
    %237 = vmatprep.subr.mxu0 0.0
    %238 = vmatpush2.msra.mxu0 0.0
    %239 = vmatprep.subr.mxu0 0.0
    %240 = vmatpush2.msra.mxu0 0.0
    %241 = vmatprep.subr.mxu0 0.0
    %242 = vmatpush2.msra.mxu0 0.0
    %243 = vmatprep.subr.mxu0 0.0
    %244 = vmatpush2.msra.mxu0 0.0
    %245 = vmatprep.subr.mxu0 0.0
    %246 = vmatpush2.msra.mxu0 0.0
    %247 = vmatprep.subr.mxu0 0.0
    %248 = vmatpush2.msra.mxu0 0.0
    %249 = vmatprep.subr.mxu0 0.0
    %250 = vmatpush2.msra.mxu0 0.0
    %251 = vmatprep.mubr.f32.mxu0 0.0
    %252 = vmatmul.mubr.f32.gmra.mxu0 %v166
    %v253 = vpop.f32.mrf.mxu0
    %v254 = vadd.f32 %v186, %v253
    %v255 = vpop.f32.mrf.mxu0
    %256 = vdwg.mxu0
    %v257 = vlaneseq
    %v258 = vshrl.u32 %v257, 7
    %v259 = vsub.s32 3, %v258
    %v260 = vrot.slane %v39, %v259
    %v261 = vmax.f32 %v254, %v260
    %v262 = vlaneseq
    %v263 = vshrl.u32 %v262, 7
    %v264 = vsub.s32 4, %v263
    %v265 = vrot.slane %v39, %v264
    %v266 = vmin.f32 %v261, %v265
    %267 = vst [vmem:[%s2] sm:$0x3] %v266
    // Predicated region
    $region18: #{actor_forward.1} parent=1 // pred_check
      _
    $region19: #{actor_forward.1} parent=1 // pred_check_branch
      %269 = sbr.rel (0) target = $region21
    $region20: #{actor_forward.1} parent=1 // pred_region
      _
    $region21: #{actor_forward.1} parent=1 // pred_fallthru
      _
    // Predicated region
    $region22: #{actor_forward.1} parent=1 // pred_check
      _
    $region23: #{actor_forward.1} parent=1 // pred_check_branch
      %271 = sbr.rel (0) target = $region25
    $region24: #{actor_forward.1} parent=1 // pred_region
      _
    $region25: #{actor_forward.1} parent=1 // pred_fallthru
      _
    %272 = vsyncpa [#allocation3], 1
    %273 = vsyncpa [#allocation5], 1

</llo_original>
